<compile_context>
chip_gen: v6e
topology: v6e:2x2x1
jax: 0.10.0
libtpu: 0.0.40
codegen_flags: <defaults>
</compile_context>

<pallas_src>
import jax
import jax.numpy as jnp
from jax.experimental import pallas as pl
from jax.experimental.pallas import tpu as pltpu


# Below this batch size, a pallas_call launch costs far more than the math.
_KERNEL_MIN_BATCH = 256
# Lane extent per grid step (batch tile). 512 lanes ~= 85% of HBM roofline in
# measured mem-bound kernels; the [F, 512] f32 tile is tiny (~6 KiB) so VMEM
# (incl. the 32 MiB v7x scoped default) is never a concern.
_TB = 512


def _linear_fma_kernel(x_ref, w_ref, b_ref, o_ref):
    # x_ref: [F, TB] f32 (VMEM)   -- batch on the lane dimension
    # w_ref: [O*F]   f32 (SMEM)   -- row-major PyTorch weight, flattened
    # b_ref: [O]     f32 (SMEM)
    # o_ref: [O, TB] f32 (VMEM)   -- lane-dense output
    x = x_ref[...]
    f_dim = x_ref.shape[0]
    o_dim = o_ref.shape[0]
    for o in range(o_dim):                       # static tiny loops (O=1, F=3)
        acc = x[0:1, :] * w_ref[o * f_dim + 0]   # scalar-broadcast VPU multiply
        for f in range(1, f_dim):
            acc = acc + x[f:f + 1, :] * w_ref[o * f_dim + f]
        o_ref[o:o + 1, :] = acc + b_ref[o]


def _linear_pallas(x, weight, bias):
    """Kernel path: y = x @ weight.T + bias via lane-dense batch-tiled Pallas."""
    B, F = x.shape
    O = weight.shape[0]

    # Glue layout work in plain JAX: batch onto lanes, pad to a tile multiple.
    num_tiles = pl.cdiv(B, _TB)
    B_pad = num_tiles * _TB
    x_t = x.T                                              # [F, B]
    if B_pad != B:
        x_t = jnp.pad(x_t, ((0, 0), (0, B_pad - B)))       # [F, B_pad]

    w_flat = weight.reshape(O * F).astype(jnp.float32)     # SMEM scalars
    b_flat = bias.reshape(O).astype(jnp.float32)

    y_t = pl.pallas_call(
        _linear_fma_kernel,
        out_shape=jax.ShapeDtypeStruct((O, B_pad), jnp.float32),
        grid_spec=pltpu.PrefetchScalarGridSpec(
            num_scalar_prefetch=0,
            grid=(num_tiles,),
            in_specs=[
                # [F, TB] block: sublane dim equals full extent (F=3),
                # lane dim 512 is a multiple of 128 -> legal + lane-dense.
                pl.BlockSpec((F, _TB), lambda i: (0, i)),
                # Tiny parameters as SMEM scalars: no VMEM tile, no DMA stream.
                pl.BlockSpec(memory_space=pltpu.MemorySpace.SMEM),
                pl.BlockSpec(memory_space=pltpu.MemorySpace.SMEM),
            ],
            # [O, TB] output block: lane-dense, unmasked stores.
            out_specs=pl.BlockSpec((O, _TB), lambda i: (0, i)),
        ),
        compiler_params=pltpu.CompilerParams(
            dimension_semantics=("parallel",),   # shard batch across TCs (v7x)
        ),
    )(x_t, w_flat, b_flat)

    return y_t[:, :B].T                                    # [B, O]


def multivariable_linear_regression(x, weight, bias):
    """Forward pass of nn.Linear(3, 1): y = x @ weight.T + bias.

    x:      [B, 3] float32
    weight: [1, 3] float32 (PyTorch layout: [out_features, in_features])
    bias:   [1]    float32
    returns [B, 1] float32
    """
    B = x.shape[0]
    if B < _KERNEL_MIN_BATCH:
        # Kernel launch overhead dominates at toy sizes; let XLA fuse it.
        return x @ weight.T + bias
    return _linear_pallas(x, weight, bias)


if __name__ == "__main__":
    key = jax.random.PRNGKey(0)
    kx, kw, kb = jax.random.split(key, 3)

    F, O = 3, 1
    B = 2000          # big enough to dispatch the Pallas kernel; not a
                      # multiple of the 512-lane tile, so padding is exercised.

    x = jax.random.normal(kx, (B, F), dtype=jnp.float32)

    # Deterministic init mimicking PyTorch nn.Linear default
    # (uniform in [-1/sqrt(in_features), 1/sqrt(in_features)]).
    bound = 1.0 / jnp.sqrt(jnp.float32(F))
    weight = jax.random.uniform(kw, (O, F), dtype=jnp.float32,
                                minval=-bound, maxval=bound)
    bias = jax.random.uniform(kb, (O,), dtype=jnp.float32,
                              minval=-bound, maxval=bound)

    # Kernel path.
    y = multivariable_linear_regression(x, weight, bias)
    y = jax.block_until_ready(y)
    y_ref = x @ weight.T + bias
    assert y.shape == (B, O)
    assert jnp.allclose(y, y_ref, atol=1e-5, rtol=1e-5)

    # Tiny-batch fallback path (no kernel launch) still matches the module.
    x_small = x[:8]
    y_small = jax.block_until_ready(
        multivariable_linear_regression(x_small, weight, bias))
    assert jnp.allclose(y_small, x_small @ weight.T + bias, atol=1e-5, rtol=1e-5)

    print("KERNEL_OK")
</pallas_src>

<mosaic_0001>
module attributes {stable_mosaic.version = 11 : i64} {
  func.func @_linear_fma_kernel(%arg0: i32, %arg1: memref<3x512xf32, #tpu.memory_space<vmem>>, %arg2: memref<3xf32, #tpu.memory_space<smem>>, %arg3: memref<1xf32, #tpu.memory_space<smem>>, %arg4: memref<1x512xf32, #tpu.memory_space<vmem>>) attributes {dimension_semantics = [#tpu.dimension_semantics<parallel>], iteration_bounds = array<i64: 4>, scalar_prefetch = 0 : i64, scratch_operands = 0 : i64, tpu.core_type = #tpu.core_type<tc>, window_params = [{transform_indices = @transform_0, window_bounds = array<i64: 3, 512>}, {transform_indices = @transform_1, window_bounds = array<i64: 3>}, {transform_indices = @transform_2, window_bounds = array<i64: 1>}, {transform_indices = @transform_3, window_bounds = array<i64: 1, 512>}]} {
    %c0 = arith.constant 0 : index
    %c0_0 = arith.constant 0 : index
    %0 = vector.load %arg1[%c0, %c0_0] : memref<3x512xf32, #tpu.memory_space<vmem>>, vector<3x512xf32>
    %1 = vector.extract_strided_slice %0 {offsets = [0, 0], sizes = [1, 512], strides = [1, 1]} : vector<3x512xf32> to vector<1x512xf32>
    %c0_1 = arith.constant 0 : index
    %2 = memref.load %arg2[%c0_1] : memref<3xf32, #tpu.memory_space<smem>>
    %3 = vector.broadcast %2 : f32 to vector<1x512xf32>
    %4 = arith.mulf %1, %3 : vector<1x512xf32>
    %5 = vector.extract_strided_slice %0 {offsets = [1, 0], sizes = [1, 512], strides = [1, 1]} : vector<3x512xf32> to vector<1x512xf32>
    %c1 = arith.constant 1 : index
    %6 = memref.load %arg2[%c1] : memref<3xf32, #tpu.memory_space<smem>>
    %7 = vector.broadcast %6 : f32 to vector<1x512xf32>
    %8 = arith.mulf %5, %7 : vector<1x512xf32>
    %9 = arith.addf %4, %8 : vector<1x512xf32>
    %10 = vector.extract_strided_slice %0 {offsets = [2, 0], sizes = [1, 512], strides = [1, 1]} : vector<3x512xf32> to vector<1x512xf32>
    %c2 = arith.constant 2 : index
    %11 = memref.load %arg2[%c2] : memref<3xf32, #tpu.memory_space<smem>>
    %12 = vector.broadcast %11 : f32 to vector<1x512xf32>
    %13 = arith.mulf %10, %12 : vector<1x512xf32>
    %14 = arith.addf %9, %13 : vector<1x512xf32>
    %c0_2 = arith.constant 0 : index
    %15 = memref.load %arg3[%c0_2] : memref<1xf32, #tpu.memory_space<smem>>
    %16 = vector.broadcast %15 : f32 to vector<1x512xf32>
    %17 = arith.addf %14, %16 : vector<1x512xf32>
    %c0_3 = arith.constant 0 : index
    %c0_4 = arith.constant 0 : index
    %18 = vector.load %arg4[%c0_3, %c0_4] : memref<1x512xf32, #tpu.memory_space<vmem>>, vector<1x512xf32>
    tpu.vector_store %arg4[%c0_3, %c0_4], %17 {strides = array<i32>} : memref<1x512xf32, #tpu.memory_space<vmem>>, vector<1x512xf32>,
    return
  }
  func.func @transform_0(%arg0: i32) -> (i32, i32) {
    %c0_i32 = arith.constant 0 : i32
    %c0_i32_0 = arith.constant 0 : i32
    return %c0_i32, %arg0 : i32, i32
  }
  func.func @transform_1(%arg0: i32) -> i32 {
    %c0_i32 = arith.constant 0 : i32
    %c0_i32_0 = arith.constant 0 : i32
    return %c0_i32 : i32
  }
  func.func @transform_2(%arg0: i32) -> i32 {
    %c0_i32 = arith.constant 0 : i32
    %c0_i32_0 = arith.constant 0 : i32
    return %c0_i32 : i32
  }
  func.func @transform_3(%arg0: i32) -> (i32, i32) {
    %c0_i32 = arith.constant 0 : i32
    %c0_i32_0 = arith.constant 0 : i32
    return %c0_i32, %arg0 : i32, i32
  }
}

</mosaic_0001>

<llo_original>
// kernel: tpu_custom_call.1
$region0: #{tpu_custom_call.1}
  #allocation0 [shape = 'u32[]', space=smem, size = 0x4, offset = 0x4, fixed_abs, tag = 'smem constant byte address 0x4 - core index']
  #allocation1 [shape = 'u32[144,128]{1,0:T(1,128)}', space=vmem, size = 0x12000, scoped, tag = 'internal scratch']
  #allocation2 [shape = 'f32[1]{0:T(128)S(6)}', space=smem, size = 0x200, scoped, tag = 'scoped memory for tpu_custom_call.1']
  %s0 = inlined_call_operand.hbm [shape: f32[3,2048], index: 0, kind: input, shape index: {}]
  %s1 = inlined_call_operand.vmem [shape: f32[3], index: 1, kind: input, shape index: {}]
  %s2 = inlined_call_operand.<no memory space> [shape: f32[1], index: 2, kind: input, shape index: {}]
  %s3 = inlined_call_operand.hbm [shape: f32[1,2048], index: 3, kind: output, shape index: {}]
  %s4 = sld [smem:[#allocation0]]
  $region53: #{tpu_custom_call.1} parent=0
    _
  %s6 = ssub.s32 1, %s4
  %s7 = scalar_select 0, %s6, %s4
  %8 = sst [smem:[#allocation2]] %s2
  $region1: #{tpu_custom_call.1} parent=0
    #allocation3 [shape = 'u8[16384]{0}', space=vmem, size = 0x4000, scoped, tag = 'input window, operand 0']
    #allocation4 [shape = 's32[2]{0}', space=sflag, size = 0x8, scoped, tag = 'scoped memory for tpu_custom_call.1']
    #allocation5 [shape = 's32[2]{0}', space=sflag, size = 0x8, scoped, tag = 'scoped memory for tpu_custom_call.1']
    #allocation6 [shape = 's32[2]{0}', space=sflag, size = 0x8, scoped, tag = 'scoped memory for tpu_custom_call.1']
    #allocation7 [shape = 'u8[512]{0}', space=smem, size = 0x200, scoped, tag = 'input window, operand 1, single buffered']
    #allocation8 [shape = 'u8[4096]{0}', space=vmem, size = 0x1000, scoped, tag = 'output window, operand 0']
    %9 = vsyncpa [#allocation4], 0
    %s10 = scalar_lea.sflag [#allocation4], 1
    %11 = vsyncpa %s10, 0
    %12 = vsyncpa [#allocation6], 0
    %13 = vsyncpa [#allocation5], 0
    %s14 = scalar_lea.sflag [#allocation5], 1
    %15 = vsyncpa %s14, 0
    loop: start=0, step=1, limit=6
    $region2: #{tpu_custom_call.1} parent=1 // loop_pre_header
      _
    $region3: #{tpu_custom_call.1} parent=1 // loop_header
      %s17 = sphi 0, %s21
      %p18 = scmp.ge.s32.totalorder %s17, 6
      %s27 = sphi 0, %s29
      %s30 = sphi 0, %s27
      %s31 = sphi 0, %s30
      %s47 = sphi 0, %s31
      %s51 = sphi 0, %s51
      %s53 = sphi 0, %s51
      %s54 = sphi 0, %s53
      %s68 = sphi 0, %s54
      %s72 = sphi 0, %s72
      %s74 = sphi 0, %s72
      %s75 = sphi 0, %s74
      %s89 = sphi 0, %s75
      %s95 = sphi 0, %s97
      %s98 = sphi 0, %s95
      %s99 = sphi 0, %s98
      %s115 = sphi 0, %s99
    $region4: #{tpu_custom_call.1} parent=1 // loop_header_branch
      %20 = sbr.rel (%p18) target = $region8
    $region5: #{tpu_custom_call.1} parent=1 // loop_body
      %s22 = ssub.s32 %s17, 1
      %s23 = ssub.s32 %s17, 2
      %s24 = sadd.s32 %s17, 1
      %s25 = ssub.s32 %s17, %s24
      %p26 = scmp.eq.s32.totalorder %s25, 0
      %s28 = sadd.s32 %s27, 1
      %s29 = scalar_select %p26, %s27, %s28
      %p32 = pneg %p26
      %p33 = scmp.eq.s32.totalorder %s17, 3
      %p34 = por %p32, %p33
      %p35 = scmp.ne.s32.totalorder %s27, %s30
      %p36 = scmp.eq.s32.totalorder %s17, 0
      %p37 = por %p35, %p36
      %p38 = scmp.ne.s32.totalorder %s27, %s30
      %p39 = scmp.eq.s32.totalorder %s22, 3
      %p40 = por %p38, %p39
      %p41 = scmp.ne.s32.totalorder %s30, %s31
      %p42 = scmp.eq.s32.totalorder %s22, 0
      %p43 = por %p41, %p42
      %p44 = scmp.ne.s32.totalorder %s30, %s31
      %p45 = scmp.eq.s32.totalorder %s23, 3
      %p46 = por %p44, %p45
      %p48 = scmp.ne.s32.totalorder %s31, %s47
      %p49 = scmp.eq.s32.totalorder %s23, 0
      %p50 = por %p48, %p49
      %s52 = sadd.s32 %s51, 1
      %p55 = scmp.eq.s32.totalorder %s17, 3
      %p56 = scmp.ne.s32.totalorder %s51, %s53
      %p57 = scmp.eq.s32.totalorder %s17, 0
      %p58 = por %p56, %p57
      %p59 = scmp.ne.s32.totalorder %s51, %s53
      %p60 = scmp.eq.s32.totalorder %s22, 3
      %p61 = por %p59, %p60
      %p62 = scmp.ne.s32.totalorder %s53, %s54
      %p63 = scmp.eq.s32.totalorder %s22, 0
      %p64 = por %p62, %p63
      %p65 = scmp.ne.s32.totalorder %s53, %s54
      %p66 = scmp.eq.s32.totalorder %s23, 3
      %p67 = por %p65, %p66
      %p69 = scmp.ne.s32.totalorder %s54, %s68
      %p70 = scmp.eq.s32.totalorder %s23, 0
      %p71 = por %p69, %p70
      %s73 = sadd.s32 %s72, 1
      %p76 = scmp.eq.s32.totalorder %s17, 3
      %p77 = scmp.ne.s32.totalorder %s72, %s74
      %p78 = scmp.eq.s32.totalorder %s17, 0
      %p79 = por %p77, %p78
      %p80 = scmp.ne.s32.totalorder %s72, %s74
      %p81 = scmp.eq.s32.totalorder %s22, 3
      %p82 = por %p80, %p81
      %p83 = scmp.ne.s32.totalorder %s74, %s75
      %p84 = scmp.eq.s32.totalorder %s22, 0
      %p85 = por %p83, %p84
      %p86 = scmp.ne.s32.totalorder %s74, %s75
      %p87 = scmp.eq.s32.totalorder %s23, 3
      %p88 = por %p86, %p87
      %p90 = scmp.ne.s32.totalorder %s75, %s89
      %p91 = scmp.eq.s32.totalorder %s23, 0
      %p92 = por %p90, %p91
      %s93 = ssub.s32 %s17, %s24
      %p94 = scmp.eq.s32.totalorder %s93, 0
      %s96 = sadd.s32 %s95, 1
      %s97 = scalar_select %p94, %s95, %s96
      %p100 = pneg %p94
      %p101 = scmp.eq.s32.totalorder %s17, 3
      %p102 = por %p100, %p101
      %p103 = scmp.ne.s32.totalorder %s95, %s98
      %p104 = scmp.eq.s32.totalorder %s17, 0
      %p105 = por %p103, %p104
      %p106 = scmp.ne.s32.totalorder %s95, %s98
      %p107 = scmp.eq.s32.totalorder %s22, 3
      %p108 = por %p106, %p107
      %p109 = scmp.ne.s32.totalorder %s98, %s99
      %p110 = scmp.eq.s32.totalorder %s22, 0
      %p111 = por %p109, %p110
      %p112 = scmp.ne.s32.totalorder %s98, %s99
      %p113 = scmp.eq.s32.totalorder %s23, 3
      %p114 = por %p112, %p113
      %p116 = scmp.ne.s32.totalorder %s99, %s115
      %p117 = scmp.eq.s32.totalorder %s23, 0
      %p118 = por %p116, %p117
      %p119 = scmp.le.s32.totalorder 1, %s17
      %p120 = scmp.lt.s32.totalorder %s17, 5
      %p121 = pnand %p119, %p120
      %p122 = pneg %p121
      // Predicated region
      $region9: #{tpu_custom_call.1} parent=5 // pred_check
        _
      $region10: #{tpu_custom_call.1} parent=5 // pred_check_branch
        %124 = sbr.rel (%p121) target = $region12
      $region11: #{tpu_custom_call.1} parent=5 // pred_region
        %s125 = ssub.s32 %s17, 1
        // Predicated region
        $region13: #{tpu_custom_call.1} parent=11 // pred_check
          %p126 = pneg %p64
        $region14: #{tpu_custom_call.1} parent=11 // pred_check_branch
          %128 = sbr.rel (%p126) target = $region16
        $region15: #{tpu_custom_call.1} parent=11 // pred_region
          %s130 = ssub.s32 16, 16
          %131 = vsyncadd [#allocation6], %s130
          %s133 = sshll.u32 %s1, 4
          %s134 = int_to_ptr.vmem [resolvable:$true] %s133
          %136 = dma.vmem_to_smem %s134, 16, [#allocation7], [#allocation6]
        $region16: #{tpu_custom_call.1} parent=11 // pred_fallthru
          _
        // Predicated region
        $region17: #{tpu_custom_call.1} parent=11 // pred_check
          %p137 = pneg %p85
        $region18: #{tpu_custom_call.1} parent=11 // pred_check_branch
          %139 = sbr.rel (%p137) target = $region20
        $region19: #{tpu_custom_call.1} parent=11 // pred_region
          _
        $region20: #{tpu_custom_call.1} parent=11 // pred_fallthru
          _
      $region12: #{tpu_custom_call.1} parent=5 // pred_fallthru
        _
      %p140 = scmp.lt.s32.totalorder %s17, 4
      // Predicated region
      $region21: #{tpu_custom_call.1} parent=5 // pred_check
        %p141 = pneg %p140
      $region22: #{tpu_custom_call.1} parent=5 // pred_check_branch
        %143 = sbr.rel (%p141) target = $region24
      $region23: #{tpu_custom_call.1} parent=5 // pred_region
        // Predicated region
        $region25: #{tpu_custom_call.1} parent=23 // pred_check
          %p144 = pneg %p37
        $region26: #{tpu_custom_call.1} parent=23 // pred_check_branch
          %146 = sbr.rel (%p144) target = $region28
        $region27: #{tpu_custom_call.1} parent=23 // pred_region
          %s147 = sand.u32 %s27, 1
          %s148 = scalar_lea.sflag [#allocation4], %s147
          %s149 = sand.u32 %s27, 1
          %s150 = smul.addr %s149, 16
          %s151 = scalar_lea.vmem [#allocation3], %s150
          %s152 = smul.u32 4, %s17
          %s154 = ssub.s32 256, 256
          %155 = vsyncadd %s148, %s154
          %s156 = smul.addr %s152, 64
          %s157 = scalar_lea.hbm %s0, %s156
          %s159 = sshll.u32 %s151, 4
          %s160 = int_to_ptr.vmem [resolvable:$true] %s159
          %162 = dma.hbm_to_vmem [thread:$0]  %s157, 256, %s160, %s148
        $region28: #{tpu_custom_call.1} parent=23 // pred_fallthru
          _
      $region24: #{tpu_custom_call.1} parent=5 // pred_fallthru
        _
      %p163 = scmp.le.s32.totalorder 1, %s17
      %p164 = scmp.lt.s32.totalorder %s17, 5
      %p165 = pnand %p163, %p164
      %p166 = pneg %p165
      // Predicated region
      $region29: #{tpu_custom_call.1} parent=5 // pred_check
        _
      $region30: #{tpu_custom_call.1} parent=5 // pred_check_branch
        %168 = sbr.rel (%p165) target = $region32
      $region31: #{tpu_custom_call.1} parent=5 // pred_region
        %s169 = ssub.s32 %s17, 1
        %s170 = sand.u32 %s30, 1
        %s171 = scalar_lea.sflag [#allocation4], %s170
        %s172 = sand.u32 %s30, 1
        %s173 = smul.addr %s172, 16
        %s174 = scalar_lea.vmem [#allocation3], %s173
        // Predicated region
        $region33: #{tpu_custom_call.1} parent=31 // pred_check
          %p175 = pneg %p43
        $region34: #{tpu_custom_call.1} parent=31 // pred_check_branch
          %177 = sbr.rel (%p175) target = $region36
        $region35: #{tpu_custom_call.1} parent=31 // pred_region
          %178 = dma.done %s171, 256
        $region36: #{tpu_custom_call.1} parent=31 // pred_fallthru
          _
        // Predicated region
        $region37: #{tpu_custom_call.1} parent=31 // pred_check
          %p179 = pneg %p64
        $region38: #{tpu_custom_call.1} parent=31 // pred_check_branch
          %181 = sbr.rel (%p179) target = $region40
        $region39: #{tpu_custom_call.1} parent=31 // pred_region
          %182 = dma.done [#allocation6], 16
        $region40: #{tpu_custom_call.1} parent=31 // pred_fallthru
          _
        %183 = sfence
        %s184 = sand.u32 %s30, 1
        %s185 = scalar_lea.sflag [#allocation4], %s184
        %s186 = sand.u32 %s30, 1
        %s187 = smul.addr %s186, 16
        %s188 = scalar_lea.vmem [#allocation3], %s187
        %p189 = pneg %p43
        %p190 = pneg %p40
        %p191 = pneg %p64
        %p192 = pneg %p61
        %p193 = pneg %p85
        %p194 = pneg %p82
        %p195 = pneg %p111
        %p196 = pneg %p108
        %s197 = sand.u32 %s98, 1
        %s198 = scalar_lea.sflag [#allocation5], %s197
        %s199 = sand.u32 %s98, 1
        %s200 = smul.addr %s199, 4
        %s201 = scalar_lea.vmem [#allocation8], %s200
        %s202 = smul.u32 4, %s22
        %s203 = smul.u32 4, %s22
        %v204 = vld [vmem:[%s174] sm:$0x77]
        %v205 = vld [vmem:[%s174 + $0x8] sm:$0x77]
        %s206 = sld [smem:[#allocation7]]
        %v207 = vstv %s206
        %v208 = vmul.f32 %v204, %v207
        %v209 = vmul.f32 %v205, %v207
        %s210 = sld [smem:[#allocation7 + $0x1]]
        %v211 = vstv %s210
        %v212 = vmul.f32 %v204, %v211
        %v213 = vmul.f32 %v205, %v211
        %v216 = vrot.slane %v212, 5
        %v217 = vrot.slane %v216, 4
        %v218 = vrot.slane %v213, 5
        %v219 = vrot.slane %v218, 4
        %v222 = vadd.f32 %v208, %v217
        %v223 = vadd.f32 %v209, %v219
        %s224 = sld [smem:[#allocation7 + $0x2]]
        %v225 = vstv %s224
        %v226 = vmul.f32 %v204, %v225
        %v227 = vmul.f32 %v205, %v225
        %v230 = vrot.slane %v226, 6
        %v231 = vrot.slane %v230, 4
        %v232 = vrot.slane %v227, 6
        %v233 = vrot.slane %v232, 4
        %v236 = vadd.f32 %v222, %v231
        %v237 = vadd.f32 %v223, %v233
        %s238 = sld [smem:[#allocation2]]
        %v239 = vstv %s238
        %v240 = vadd.f32 %v236, %v239
        %v241 = vadd.f32 %v237, %v239
        %v245 = vunpack.c.l.s4 1966171168
        %v246 = vunpack.c.0.s8 %v245
        %v247 = vlaneseq
        %v248 = vshrl.u32 %v247, 7
        %v249 = vsub.s32 %v246, %v248
        %v250 = vrot.slane %v240, %v249
        %v252 = vunpack.c.l.s4 1966171168
        %v253 = vunpack.c.0.s8 %v252
        %v254 = vlaneseq
        %v255 = vshrl.u32 %v254, 7
        %v256 = vsub.s32 %v253, %v255
        %v257 = vrot.slane %v241, %v256
        %v258 = vcombine.low %v250, %v257
        %v260 = vunpack.c.l.s4 1966171168
        %v261 = vunpack.c.0.s8 %v260
        %v262 = vlaneseq
        %v263 = vshrl.u32 %v262, 7
        %v264 = vsub.s32 %v261, %v263
        %v265 = vrot.slane %v258, %v264
        %v267 = vlaneseq
        %vm268 = vcmp.ge.s32.totalorder %v267, 0
        %vm269 = vcmp.lt.s32.totalorder %v267, 512
        %vm270 = vmand %vm268, %vm269
        %271 = vst.msk [vmem:[%s201] sm:$0xf] %vm270, %v265
        %s272 = sand.u32 %s98, 1
        %s273 = scalar_lea.sflag [#allocation5], %s272
        %s274 = sand.u32 %s98, 1
        %s275 = smul.addr %s274, 4
        %s276 = scalar_lea.vmem [#allocation8], %s275
        // Predicated region
        $region41: #{tpu_custom_call.1} parent=31 // pred_check
          %p277 = pneg %p108
        $region42: #{tpu_custom_call.1} parent=31 // pred_check_branch
          %279 = sbr.rel (%p277) target = $region44
        $region43: #{tpu_custom_call.1} parent=31 // pred_region
          %s280 = smul.u32 4, %s22
          %s282 = ssub.s32 64, 64
          %283 = vsyncadd %s273, %s282
          %s284 = smul.addr %s280, 16
          %s285 = scalar_lea.hbm %s3, %s284
          %s287 = sshll.u32 %s276, 4
          %s288 = int_to_ptr.vmem [resolvable:$true] %s287
          %290 = dma.vmem_to_hbm [thread:$0]  %s288, 64, %s285, %s273
        $region44: #{tpu_custom_call.1} parent=31 // pred_fallthru
          _
      $region32: #{tpu_custom_call.1} parent=5 // pred_fallthru
        _
      %p291 = scmp.le.s32.totalorder 2, %s17
      // Predicated region
      $region45: #{tpu_custom_call.1} parent=5 // pred_check
        %p292 = pneg %p291
      $region46: #{tpu_custom_call.1} parent=5 // pred_check_branch
        %294 = sbr.rel (%p292) target = $region48
      $region47: #{tpu_custom_call.1} parent=5 // pred_region
        %s295 = ssub.s32 %s17, 2
        // Predicated region
        $region49: #{tpu_custom_call.1} parent=47 // pred_check
          %p296 = pneg %p114
        $region50: #{tpu_custom_call.1} parent=47 // pred_check_branch
          %298 = sbr.rel (%p296) target = $region52
        $region51: #{tpu_custom_call.1} parent=47 // pred_region
          %s299 = sand.u32 %s99, 1
          %s300 = scalar_lea.sflag [#allocation5], %s299
          %s301 = sand.u32 %s99, 1
          %s302 = smul.addr %s301, 4
          %s303 = scalar_lea.vmem [#allocation8], %s302
          %304 = dma.done %s300, 64
        $region52: #{tpu_custom_call.1} parent=47 // pred_fallthru
          _
      $region48: #{tpu_custom_call.1} parent=5 // pred_fallthru
        _
    $region6: #{tpu_custom_call.1} parent=1 // loop_footer
      %s21 = sadd.s32 1, %s17
    $region7: #{tpu_custom_call.1} parent=1 // loop_footer_branch
      %16 = sbr.rel target = $region3
    $region8: #{tpu_custom_call.1} parent=1 // loop_exit
      _
    %305 = vsyncpa [#allocation4], 1
    %s306 = scalar_lea.sflag [#allocation4], 1
    %307 = vsyncpa %s306, 1
    %308 = vsyncpa [#allocation5], 1
    %s309 = scalar_lea.sflag [#allocation5], 1
    %310 = vsyncpa %s309, 1
    %311 = vsyncpa [#allocation6], 1
    %s312 = scalar_lea.sflag [#allocation6], 1
    %313 = vsyncpa %s312, 1

</llo_original>
